<compile_context>
chip_gen: v7x
topology: tpu7x:2x2x1
jax: 0.10.0
libtpu: 0.0.40
codegen_flags: <defaults>
</compile_context>

<pallas_src>
import functools
import math

import jax
import jax.numpy as jnp
from jax.experimental import pallas as pl
from jax.experimental.pallas import tpu as pltpu

NUM_BITS = 8
MSB_BITS = 4
MOMENTUM = 0.1


def _vmem_capacity_bytes():
    """Physical VMEM per core (generation aware), with a conservative fallback."""
    try:
        cap = int(getattr(pltpu.get_tpu_info(), "vmem_capacity_bytes", 0))
        if cap > 0:
            return cap
    except Exception:
        pass
    return 64 * 1024 * 1024  # v7x-sized fallback: safe on every generation


def _round_up(a, m):
    return ((a + m - 1) // m) * m


def _choose_lane_width(f):
    """Lane-dense last dim (multiple of 128); prefer >=8 sublane rows per sample."""
    for cand in (4096, 2048, 1024, 512, 256, 128):
        if f % cand == 0 and f // cand >= 8:
            return cand
    for cand in (4096, 2048, 1024, 512, 256, 128):
        if f % cand == 0:
            return cand
    return 128  # caller pads f to a multiple of 128 first, so this is reachable-safe


def _pick_groups(total, cap, prefer_even_steps=False):
    """Largest divisor of `total` that is <= cap; optionally prefer an even #steps."""
    cap = max(1, min(total, cap))
    divs = set()
    d = 1
    while d * d <= total:
        if total % d == 0:
            divs.add(d)
            divs.add(total // d)
        d += 1
    cands = sorted(v for v in divs if v <= cap)
    if not cands:
        return 1
    if prefer_even_steps:
        even = [v for v in cands if (total // v) % 2 == 0]
        if even:
            return even[-1]
    return cands[-1]


def _pad_features(xflat, f_target):
    f = xflat.shape[1]
    if f_target == f:
        return xflat
    return jnp.pad(xflat, ((0, 0), (0, f_target - f)))


# --------------------------------------------------------------------------------------
# Kernels
# --------------------------------------------------------------------------------------
def _fused_kernel(x_ref, q_ref, msb_ref, maxv_ref, *, num_bits, msb_bits):
    """Single pass: per-sample max(|x|) -> batch mean -> delta -> fake-quant + dequant."""
    x = x_ref[...].astype(jnp.float32)                                   # (n, rows, lane)
    per_sample = jnp.max(jnp.max(jnp.abs(x), axis=2), axis=1, keepdims=True)   # (n, 1)
    maxv_ref[...] = jnp.mean(per_sample, keepdims=True)                  # (1, 1)
    delta = maxv_ref[0, 0] * (1.0 / 2.0 ** num_bits)                     # exact /2**nb

    qmax = 2.0 ** num_bits - 1.0
    scale = 2.0 ** (num_bits - msb_bits)
    inv_scale = 2.0 ** (msb_bits - num_bits)                             # exact power of two
    q = jnp.round(jnp.clip(x / delta, 0.0, qmax))                        # true div: parity w/ torch
    msb = jnp.clip(jnp.round(q * inv_scale) * scale, 0.0, qmax)
    q_ref[...] = (q * delta).astype(q_ref.dtype)
    msb_ref[...] = (msb * delta).astype(msb_ref.dtype)


def _pass1_max_kernel(x_ref, maxv_ref, m_acc, s_acc, *, inv_n):
    """Streaming per-sample max(|x|); batch mean folded into the final grid step."""
    i = pl.program_id(0)   # sample index
    j = pl.program_id(1)   # row-group block index within the sample

    @pl.when(jnp.logical_and(i == 0, j == 0))
    def _():
        s_acc[...] = jnp.zeros_like(s_acc)

    @pl.when(j == 0)
    def _():
        m_acc[...] = jnp.zeros_like(m_acc)          # |x| >= 0, so 0 is a valid identity

    x = jnp.abs(x_ref[...].astype(jnp.float32))[0]  # (bg, sub, lane)
    # VPU-only running max (reduce over the major axis = elementwise across vregs).
    m_acc[...] = jnp.maximum(m_acc[...], jnp.max(x, axis=0))

    @pl.when(j == pl.num_programs(1) - 1)
    def _():
        # One cross-lane/sublane reduce per sample, off the streaming critical path.
        s_acc[...] += jnp.max(m_acc[...], keepdims=True)

    @pl.when(jnp.logical_and(i == pl.num_programs(0) - 1,
                             j == pl.num_programs(1) - 1))
    def _():
        maxv_ref[...] = s_acc[...] * inv_n          # mean over the batch


def _quantize_kernel(delta_ref, x_ref, q_ref, msb_ref, *, num_bits, msb_bits):
    """Elementwise fake-quant (unsigned, min=0) + dequantize on a lane-dense slab."""
    delta = delta_ref[0, 0]
    qmax = 2.0 ** num_bits - 1.0
    scale = 2.0 ** (num_bits - msb_bits)
    inv_scale = 2.0 ** (msb_bits - num_bits)        # power of two: q*inv_scale == q/scale exactly

    x = x_ref[...].astype(jnp.float32)
    q = jnp.round(jnp.clip(x / delta, 0.0, qmax))   # true division: matches torch's div_
    msb = jnp.clip(jnp.round(q * inv_scale) * scale, 0.0, qmax)
    q_ref[...] = (q * delta).astype(q_ref.dtype)
    msb_ref[...] = (msb * delta).astype(msb_ref.dtype)


# --------------------------------------------------------------------------------------
# Wrapper
# --------------------------------------------------------------------------------------
def efficient_quantize_forward(x, running_max_values,
                               num_bits=NUM_BITS, msb_bits=MSB_BITS,
                               momentum=MOMENTUM, force_two_pass=False):
    """Training-mode forward of EfficientQuantize. Returns (q, msb, new_running_max)."""
    n = x.shape[0]
    f = math.prod(x.shape[1:])
    itemsize = jnp.dtype(x.dtype).itemsize
    sub = max(8, 32 // itemsize)                    # sublane quantum: 8 f32 / 16 bf16 / 32 int8

    vmem_limit = int(_vmem_capacity_bytes() * 0.75)
    budget = int(vmem_limit * 0.85)                 # double-buffered streams + small headroom

    f128 = _round_up(f, 128)                        # lane-pad fallback for arbitrary NCHW shapes
    lane = _choose_lane_width(f128)
    rows = f128 // lane
    xflat = x.reshape(n, f)

    # -------------------- fused single-pass path (small activations) --------------------
    fused_bytes = n * rows * lane * (3 * itemsize + 16)   # in + 2 outs (x2 buf) + f32 temps
    if not force_two_pass and fused_bytes <= min(budget // 2, 32 * 1024 * 1024):
        x3 = _pad_features(xflat, rows * lane).reshape(n, rows, lane)
        total = n * rows * lane
        q3, msb3, maxv = pl.pallas_call(
            functools.partial(_fused_kernel, num_bits=num_bits, msb_bits=msb_bits),
            out_shape=(jax.ShapeDtypeStruct((n, rows, lane), x.dtype),
                       jax.ShapeDtypeStruct((n, rows, lane), x.dtype),
                       jax.ShapeDtypeStruct((1, 1), jnp.float32)),
            grid=(1,),
            in_specs=[pl.BlockSpec((n, rows, lane), lambda i: (0, 0, 0))],
            out_specs=(pl.BlockSpec((n, rows, lane), lambda i: (0, 0, 0)),
                       pl.BlockSpec((n, rows, lane), lambda i: (0, 0, 0)),
                       pl.BlockSpec((1, 1), lambda i: (0, 0))),
            compiler_params=pltpu.CompilerParams(
                dimension_semantics=("arbitrary",),
                vmem_limit_bytes=vmem_limit),
            cost_estimate=pl.CostEstimate(
                flops=14 * total, transcendentals=0,
                bytes_accessed=total * 3 * itemsize),
        )(x3)
        q = q3.reshape(n, rows * lane)[:, :f].reshape(x.shape)
        msb = msb3.reshape(n, rows * lane)[:, :f].reshape(x.shape)

    # -------------------- two-pass streaming path (large activations) -------------------
    else:
        rows_pad = _round_up(rows, sub)             # sublane-aligned rows per sample
        x3 = _pad_features(xflat, rows_pad * lane).reshape(n, rows_pad, lane)
        total = n * rows_pad * lane

        # pass 1: per-sample max(|x|); blocks (1, bg1, sub, lane) independent of batch size
        g1 = rows_pad // sub
        cap1 = budget // max(2 * sub * lane * itemsize, 1)
        want_steps1 = max(1, -(-4 // n))            # keep >= ~4 pipelined grid steps overall
        cap1 = min(cap1, max(1, g1 // want_steps1))
        bg1 = _pick_groups(g1, cap1)
        x4 = x3.reshape(n, g1, sub, lane)

        maxv = pl.pallas_call(
            functools.partial(_pass1_max_kernel, inv_n=1.0 / n),
            out_shape=jax.ShapeDtypeStruct((1, 1), jnp.float32),
            grid=(n, g1 // bg1),
            in_specs=[pl.BlockSpec((1, bg1, sub, lane), lambda i, j: (i, j, 0, 0))],
            out_specs=pl.BlockSpec((1, 1), lambda i, j: (0, 0)),
            scratch_shapes=[pltpu.VMEM((sub, lane), jnp.float32),   # running max (vreg-shaped)
                            pltpu.VMEM((1, 1), jnp.float32)],       # sum of per-sample maxima
            compiler_params=pltpu.CompilerParams(
                dimension_semantics=("arbitrary", "arbitrary"),
                vmem_limit_bytes=vmem_limit),
            cost_estimate=pl.CostEstimate(
                flops=2 * total, transcendentals=0,
                bytes_accessed=total * itemsize),
        )(x4)

        delta = maxv * (1.0 / 2.0 ** num_bits)      # (1,1); tiny XLA glue, exact power of 2

        # pass 2: elementwise quantize over a batch-flattened lane-dense slab
        total_rows = n * rows_pad
        x2 = x3.reshape(total_rows, lane)
        g2 = total_rows // sub
        cap2 = budget // max(6 * sub * lane * itemsize, 1)
        cap2 = min(cap2, max(1, g2 // 4))           # >= ~4 grid steps for pipelining
        bg2 = _pick_groups(g2, cap2, prefer_even_steps=True)   # even #steps helps v7x 2 TCs
        br2 = bg2 * sub

        q2, msb2 = pl.pallas_call(
            functools.partial(_quantize_kernel, num_bits=num_bits, msb_bits=msb_bits),
            out_shape=(jax.ShapeDtypeStruct((total_rows, lane), x.dtype),
                       jax.ShapeDtypeStruct((total_rows, lane), x.dtype)),
            grid=(total_rows // br2,),
            in_specs=[pl.BlockSpec(memory_space=pltpu.MemorySpace.SMEM),
                      pl.BlockSpec((br2, lane), lambda j: (j, 0))],
            out_specs=(pl.BlockSpec((br2, lane), lambda j: (j, 0)),
                       pl.BlockSpec((br2, lane), lambda j: (j, 0))),
            compiler_params=pltpu.CompilerParams(
                dimension_semantics=("parallel",),
                vmem_limit_bytes=vmem_limit),
            cost_estimate=pl.CostEstimate(
                flops=12 * total, transcendentals=0,
                bytes_accessed=total * 3 * itemsize),
        )(delta, x2)
        q = q2.reshape(n, rows_pad * lane)[:, :f].reshape(x.shape)
        msb = msb2.reshape(n, rows_pad * lane)[:, :f].reshape(x.shape)

    # Running-buffer EMA exactly as the module: running.mul_(m).add_(max * (1 - m)).
    # TODO(synk): the original PyTorch in-place add_ of the (1,1,1)-shaped max into the
    # (1,)-shaped buffer would raise for 4D inputs with shape_measure=(1,); we apply the
    # intended scalar EMA here (functionally, returning the new buffer value).
    new_running_max = running_max_values * momentum + maxv[0, 0] * (1.0 - momentum)
    return q, msb, new_running_max


# --------------------------------------------------------------------------------------
# Pure-JAX reference (mirrors the PyTorch math) and self-test
# --------------------------------------------------------------------------------------
def _reference_forward(x, num_bits=NUM_BITS, msb_bits=MSB_BITS):
    n = x.shape[0]
    xa = jnp.abs(x.reshape(n, -1).astype(jnp.float32))
    max_values = jnp.mean(jnp.max(xa, axis=-1))
    delta = max_values / 2.0 ** num_bits
    qmax = 2.0 ** num_bits - 1.0
    scale = 2.0 ** (num_bits - msb_bits)
    inv_scale = 2.0 ** (msb_bits - num_bits)
    xq = x.astype(jnp.float32)
    q = jnp.round(jnp.clip(xq / delta, 0.0, qmax))
    msb = jnp.clip(jnp.round(q * inv_scale) * scale, 0.0, qmax)
    return (q * delta).astype(x.dtype), (msb * delta).astype(x.dtype), max_values


if __name__ == "__main__":
    key = jax.random.PRNGKey(0)
    k1, k2 = jax.random.split(key)

    # Small activation (fused single-pass path), NCHW like the PyTorch module.
    x1 = jax.random.normal(k1, (2, 4, 16, 16), dtype=jnp.float32)
    running = jnp.zeros((1,), dtype=jnp.float32)        # module buffer, shape_measure=(1,)

    q1, msb1, new_running = efficient_quantize_forward(x1, running)
    jax.block_until_ready((q1, msb1, new_running))

    q1_ref, msb1_ref, maxv1_ref = _reference_forward(x1)
    assert q1.shape == x1.shape and msb1.shape == x1.shape and q1.dtype == x1.dtype
    assert jnp.allclose(q1, q1_ref, atol=1e-5, rtol=1e-5)
    assert jnp.allclose(msb1, msb1_ref, atol=1e-5, rtol=1e-5)
    expect_running = running * MOMENTUM + maxv1_ref * (1.0 - MOMENTUM)
    assert jnp.allclose(new_running, expect_running, atol=1e-6, rtol=1e-6)

    # Slightly larger activation, forced through the two-pass streaming path so both
    # code paths are compiled and checked on-device.
    x2 = jax.random.normal(k2, (2, 8, 32, 32), dtype=jnp.float32)
    q2, msb2, _ = efficient_quantize_forward(x2, running, force_two_pass=True)
    jax.block_until_ready((q2, msb2))
    q2_ref, msb2_ref, _ = _reference_forward(x2)
    assert jnp.allclose(q2, q2_ref, atol=1e-5, rtol=1e-5)
    assert jnp.allclose(msb2, msb2_ref, atol=1e-5, rtol=1e-5)

    print("KERNEL_OK")
</pallas_src>

<mosaic_0001>
module attributes {stable_mosaic.version = 11 : i64} {
  func.func @_fused_kernel(%arg0: i32, %arg1: memref<2x8x128xf32, #tpu.memory_space<vmem>>, %arg2: memref<2x8x128xf32, #tpu.memory_space<vmem>>, %arg3: memref<2x8x128xf32, #tpu.memory_space<vmem>>, %arg4: memref<1x1xf32, #tpu.memory_space<vmem>>) attributes {dimension_semantics = [#tpu.dimension_semantics<arbitrary>], iteration_bounds = array<i64: 1>, scalar_prefetch = 0 : i64, scratch_operands = 0 : i64, tpu.core_type = #tpu.core_type<tc>, window_params = [{pipeline_mode = #tpu.pipeline_mode<synchronous>, transform_indices = @transform_0, window_bounds = array<i64: 2, 8, 128>}, {pipeline_mode = #tpu.pipeline_mode<synchronous>, transform_indices = @transform_1, window_bounds = array<i64: 2, 8, 128>}, {pipeline_mode = #tpu.pipeline_mode<synchronous>, transform_indices = @transform_2, window_bounds = array<i64: 2, 8, 128>}, {pipeline_mode = #tpu.pipeline_mode<synchronous>, transform_indices = @transform_3, window_bounds = array<i64: 1, 1>}]} {
    %c0 = arith.constant 0 : index
    %c0_0 = arith.constant 0 : index
    %c0_1 = arith.constant 0 : index
    %0 = vector.load %arg1[%c0, %c0_0, %c0_1] : memref<2x8x128xf32, #tpu.memory_space<vmem>>, vector<2x8x128xf32>
    %1 = math.absf %0 : vector<2x8x128xf32>
    %cst = arith.constant dense<0xFF800000> : vector<2x8xf32>
    %2 = vector.multi_reduction <maximumf>, %1, %cst [2] : vector<2x8x128xf32> to vector<2x8xf32>
    %cst_2 = arith.constant dense<0xFF800000> : vector<2xf32>
    %3 = vector.multi_reduction <maximumf>, %2, %cst_2 [1] : vector<2x8xf32> to vector<2xf32>
    %4 = vector.shape_cast %3 : vector<2xf32> to vector<2x1xf32>
    %5 = vector.shape_cast %4 : vector<2x1xf32> to vector<1x2x1xf32>
    %cst_3 = arith.constant dense<0.000000e+00> : vector<1xf32>
    %6 = vector.multi_reduction <add>, %5, %cst_3 [1, 2] : vector<1x2x1xf32> to vector<1xf32>
    %7 = vector.shape_cast %6 : vector<1xf32> to vector<1x1x1xf32>
    %8 = vector.extract %7[0, 0, 0] : f32 from vector<1x1x1xf32>
    %9 = vector.broadcast %8 : f32 to vector<1x1xf32>
    %cst_4 = arith.constant 2.000000e+00 : f32
    %10 = vector.broadcast %cst_4 : f32 to vector<1x1xf32>
    %11 = arith.divf %9, %10 : vector<1x1xf32>
    %c0_5 = arith.constant 0 : index
    %c0_6 = arith.constant 0 : index
    %12 = vector.load %arg4[%c0_5, %c0_6] : memref<1x1xf32, #tpu.memory_space<vmem>>, vector<1x1xf32>
    tpu.vector_store %arg4[%c0_5, %c0_6], %11 {strides = array<i32>} : memref<1x1xf32, #tpu.memory_space<vmem>>, vector<1x1xf32>,
    %c0_7 = arith.constant 0 : index
    %c0_8 = arith.constant 0 : index
    %13 = vector.load %arg4[%c0_7, %c0_8] : memref<1x1xf32, #tpu.memory_space<vmem>>, vector<1x1xf32>
    %14 = vector.extract %13[0, 0] : f32 from vector<1x1xf32>
    %cst_9 = arith.constant 3.906250e-03 : f32
    %15 = arith.mulf %14, %cst_9 : f32
    %16 = vector.broadcast %15 : f32 to vector<2x8x128xf32>
    %17 = arith.divf %0, %16 : vector<2x8x128xf32>
    %cst_10 = arith.constant 0.000000e+00 : f32
    %cst_11 = arith.constant 2.550000e+02 : f32
    %18 = vector.broadcast %cst_10 : f32 to vector<2x8x128xf32>
    %19 = arith.maximumf %18, %17 : vector<2x8x128xf32>
    %20 = vector.broadcast %cst_11 : f32 to vector<2x8x128xf32>
    %21 = arith.minimumf %20, %19 : vector<2x8x128xf32>
    %22 = math.roundeven %21 : vector<2x8x128xf32>
    %cst_12 = arith.constant 6.250000e-02 : f32
    %23 = vector.broadcast %cst_12 : f32 to vector<2x8x128xf32>
    %24 = arith.mulf %22, %23 : vector<2x8x128xf32>
    %25 = math.roundeven %24 : vector<2x8x128xf32>
    %cst_13 = arith.constant 1.600000e+01 : f32
    %26 = vector.broadcast %cst_13 : f32 to vector<2x8x128xf32>
    %27 = arith.mulf %25, %26 : vector<2x8x128xf32>
    %cst_14 = arith.constant 0.000000e+00 : f32
    %cst_15 = arith.constant 2.550000e+02 : f32
    %28 = vector.broadcast %cst_14 : f32 to vector<2x8x128xf32>
    %29 = arith.maximumf %28, %27 : vector<2x8x128xf32>
    %30 = vector.broadcast %cst_15 : f32 to vector<2x8x128xf32>
    %31 = arith.minimumf %30, %29 : vector<2x8x128xf32>
    %32 = vector.broadcast %15 : f32 to vector<2x8x128xf32>
    %33 = arith.mulf %22, %32 : vector<2x8x128xf32>
    %c0_16 = arith.constant 0 : index
    %c0_17 = arith.constant 0 : index
    %c0_18 = arith.constant 0 : index
    %34 = vector.load %arg2[%c0_16, %c0_17, %c0_18] : memref<2x8x128xf32, #tpu.memory_space<vmem>>, vector<2x8x128xf32>
    tpu.vector_store %arg2[%c0_16, %c0_17, %c0_18], %33 {strides = array<i32>} : memref<2x8x128xf32, #tpu.memory_space<vmem>>, vector<2x8x128xf32>,
    %35 = vector.broadcast %15 : f32 to vector<2x8x128xf32>
    %36 = arith.mulf %31, %35 : vector<2x8x128xf32>
    %c0_19 = arith.constant 0 : index
    %c0_20 = arith.constant 0 : index
    %c0_21 = arith.constant 0 : index
    %37 = vector.load %arg3[%c0_19, %c0_20, %c0_21] : memref<2x8x128xf32, #tpu.memory_space<vmem>>, vector<2x8x128xf32>
    tpu.vector_store %arg3[%c0_19, %c0_20, %c0_21], %36 {strides = array<i32>} : memref<2x8x128xf32, #tpu.memory_space<vmem>>, vector<2x8x128xf32>,
    return
  }
  func.func @transform_0(%arg0: i32) -> (i32, i32, i32) {
    %c0_i32 = arith.constant 0 : i32
    %c0_i32_0 = arith.constant 0 : i32
    %c0_i32_1 = arith.constant 0 : i32
    %c0_i32_2 = arith.constant 0 : i32
    return %c0_i32, %c0_i32_0, %c0_i32_1 : i32, i32, i32
  }
  func.func @transform_1(%arg0: i32) -> (i32, i32, i32) {
    %c0_i32 = arith.constant 0 : i32
    %c0_i32_0 = arith.constant 0 : i32
    %c0_i32_1 = arith.constant 0 : i32
    %c0_i32_2 = arith.constant 0 : i32
    return %c0_i32, %c0_i32_0, %c0_i32_1 : i32, i32, i32
  }
  func.func @transform_2(%arg0: i32) -> (i32, i32, i32) {
    %c0_i32 = arith.constant 0 : i32
    %c0_i32_0 = arith.constant 0 : i32
    %c0_i32_1 = arith.constant 0 : i32
    %c0_i32_2 = arith.constant 0 : i32
    return %c0_i32, %c0_i32_0, %c0_i32_1 : i32, i32, i32
  }
  func.func @transform_3(%arg0: i32) -> (i32, i32) {
    %c0_i32 = arith.constant 0 : i32
    %c0_i32_0 = arith.constant 0 : i32
    %c0_i32_1 = arith.constant 0 : i32
    return %c0_i32, %c0_i32_0 : i32, i32
  }
}

</mosaic_0001>

<llo_original>
// kernel: tpu_custom_call.1
$region0: #{tpu_custom_call.1}
  #allocation0 [shape = 'u32[]', space=smem, size = 0x4, offset = 0x4, fixed_abs, tag = 'smem constant byte address 0x4 - core index']
  #allocation1 [shape = 'u32[144,128]{1,0:T(1,128)}', space=vmem, size = 0x12000, scoped, tag = 'internal scratch']
  %s0 = inlined_call_operand.hbm [shape: f32[2,8,128], index: 0, kind: input, shape index: {}]
  %s1 = inlined_call_operand.hbm [shape: f32[2,8,128], index: 1, kind: output, shape index: {0}]
  %s2 = inlined_call_operand.hbm [shape: f32[2,8,128], index: 2, kind: output, shape index: {1}]
  %s3 = inlined_call_operand.hbm [shape: f32[1,1], index: 3, kind: output, shape index: {2}]
  %4 = xla_tuple %s1, %s2, %s3
  %s5 = sld [smem:[#allocation0]]
  $region34: #{tpu_custom_call.1} parent=0
    _
  %s7 = ssub.s32 1, %s5
  %s8 = scalar_select 0, %s7, %s5
  $region1: #{tpu_custom_call.1} parent=0
    #allocation2 [shape = 'u8[8192]{0}', space=vmem, size = 0x2000, scoped, tag = 'input window, operand 0, single buffered']
    #allocation3 [shape = 's32[1]{0}', space=sflag, size = 0x4, scoped, tag = 'scoped memory for tpu_custom_call.1']
    #allocation4 [shape = 's32[1]{0}', space=sflag, size = 0x4, scoped, tag = 'scoped memory for tpu_custom_call.1']
    #allocation5 [shape = 'u8[8192]{0}', space=vmem, size = 0x2000, scoped, tag = 'output window, operand 0, single buffered']
    #allocation6 [shape = 'u8[8192]{0}', space=vmem, size = 0x2000, scoped, tag = 'output window, operand 1, single buffered']
    #allocation7 [shape = 's32[1]{0}', space=sflag, size = 0x4, scoped, tag = 'scoped memory for tpu_custom_call.1']
    #allocation8 [shape = 'u8[512]{0}', space=vmem, size = 0x400, scoped, tag = 'output window, operand 2, single buffered']
    %9 = vsyncpa [#allocation3], 0
    %10 = vsyncpa [#allocation4], 0
    %11 = vsyncpa [#allocation7], 0
    // Predicated region
    $region2: #{tpu_custom_call.1} parent=1 // pred_check
      _
    $region3: #{tpu_custom_call.1} parent=1 // pred_check_branch
      %13 = sbr.rel (0) target = $region5
    $region4: #{tpu_custom_call.1} parent=1 // pred_region
      %s15 = ssub.s32 256, 256
      %16 = vsyncadd [#allocation3], %s15
      %s17 = sshll.u32 [#allocation2], 4
      %s18 = int_to_ptr.vmem [resolvable:$true] %s17
      %23 = dma.hbm_to_vmem [thread:$0]  %s0, 256, %s18, [#allocation3], 128, 128, 8
    $region5: #{tpu_custom_call.1} parent=1 // pred_fallthru
      _
    // Predicated region
    $region6: #{tpu_custom_call.1} parent=1 // pred_check
      _
    $region7: #{tpu_custom_call.1} parent=1 // pred_check_branch
      %25 = sbr.rel (0) target = $region9
    $region8: #{tpu_custom_call.1} parent=1 // pred_region
      %26 = dma.done [#allocation3], 256
    $region9: #{tpu_custom_call.1} parent=1 // pred_fallthru
      _
    %v27 = vld [vmem:[#allocation2] sm:$0xff]
    %v28 = vld [vmem:[#allocation2 + $0x8] sm:$0xff]
    %v29 = vand.u32 2147483647, %v27
    %v30 = vand.u32 2147483647, %v28
    %31 = vmax.xlane.f32.xlu0 %v29
    %v32 = vpop.xlane.xlu0 %31
    %33 = vmax.xlane.f32.xlu0 %v30
    %v34 = vpop.xlane.xlu0 %33
    %v37 = vlaneseq
    %v38 = vand.u32 %v37, 127
    %v39 = vlaneseq
    %v40 = vshrl.u32 %v39, 7
    %v41 = vsub.s32 %v38, %v40
    %v42 = vrot.slane %v32, %v41
    %v43 = vlaneseq
    %v44 = vshrl.u32 %v43, 7
    %v45 = vsub.s32 %v38, %v44
    %v46 = vrot.slane %v34, %v45
    %vm47 = vcmask 1041409
    %v48 = vsel %vm47, %v46, %v42
    %vm50 = vcmask 58368
    %v51 = vsel %vm50, %v48, -inf
    %52 = vmax.xlane.f32.xlu0 %v51
    %v53 = vpop.xlane.xlu0 %52
    %vm54 = vcmask 1024
    %v55 = vsel %vm54, %v53, 0.0
    %56 = vadd.xlane.f32.xlu0 %v55
    %v57 = vpop.xlane.xlu0 %56
    %v58 = vrot.slane %v57, 4
    %v59 = vadd.f32 %v57, %v58
    %v60 = vrot.slane %v59, 2
    %v61 = vadd.f32 %v59, %v60
    %v62 = vrot.slane %v61, 1
    %v63 = vadd.f32 %v61, %v62
    %s64 = vtos %v63
    %v65 = vstv %s64
    %v66 = vrcp.pop 2.0
    %v67 = vmul.f32 %v65, %v66
    %vm68 = vcmask 0
    %69 = vst.msk [vmem:[#allocation8] sm:$0x1] %vm68, %v67
    %v70 = vld [vmem:[#allocation8] sm:$0x1]
    %s71 = vtos %v70
    %s72 = smul.f32 %s71, 0.00390625
    %v73 = vstv %s72
    %v74 = vrcp.pop %v73
    %v75 = vmul.f32 %v27, %v74
    %v76 = vmul.f32 %v28, %v74
    %v77 = vmax.f32 %v75, 0.0
    %v78 = vmax.f32 %v76, 0.0
    %v79 = vmin.f32 %v77, 255.0
    %v80 = vmin.f32 %v78, 255.0
    %v81 = vround.ne.pseudo %v79
    %v82 = vround.ne.pseudo %v80
    %v83 = vmul.f32 %v81, 0.0625
    %v84 = vmul.f32 %v82, 0.0625
    %v85 = vround.ne.pseudo %v83
    %v86 = vround.ne.pseudo %v84
    %v87 = vmul.f32 %v85, 16.0
    %v88 = vmul.f32 %v86, 16.0
    %v89 = vmax.f32 %v87, 0.0
    %v90 = vmax.f32 %v88, 0.0
    %v91 = vmin.f32 %v89, 255.0
    %v92 = vmin.f32 %v90, 255.0
    %v93 = vmul.f32 %v81, %v73
    %v94 = vmul.f32 %v82, %v73
    %95 = vst [vmem:[#allocation5] sm:$0xff] %v93
    %96 = vst [vmem:[#allocation5 + $0x8] sm:$0xff] %v94
    %v97 = vmul.f32 %v91, %v73
    %v98 = vmul.f32 %v92, %v73
    %99 = vst [vmem:[#allocation6] sm:$0xff] %v97
    %100 = vst [vmem:[#allocation6 + $0x8] sm:$0xff] %v98
    // Predicated region
    $region10: #{tpu_custom_call.1} parent=1 // pred_check
      _
    $region11: #{tpu_custom_call.1} parent=1 // pred_check_branch
      %102 = sbr.rel (0) target = $region13
    $region12: #{tpu_custom_call.1} parent=1 // pred_region
      %s104 = ssub.s32 256, 256
      %105 = vsyncadd [#allocation4], %s104
      %s106 = sshll.u32 [#allocation5], 4
      %s107 = int_to_ptr.vmem [resolvable:$true] %s106
      %112 = dma.vmem_to_hbm [thread:$0]  %s107, 256, %s1, [#allocation4], 128, 128, 8
    $region13: #{tpu_custom_call.1} parent=1 // pred_fallthru
      _
    // Predicated region
    $region14: #{tpu_custom_call.1} parent=1 // pred_check
      _
    $region15: #{tpu_custom_call.1} parent=1 // pred_check_branch
      %114 = sbr.rel (0) target = $region17
    $region16: #{tpu_custom_call.1} parent=1 // pred_region
      %s116 = ssub.s32 256, 256
      %117 = vsyncadd [#allocation7], %s116
      %s118 = sshll.u32 [#allocation6], 4
      %s119 = int_to_ptr.vmem [resolvable:$true] %s118
      %124 = dma.vmem_to_hbm [thread:$0]  %s119, 256, %s2, [#allocation7], 128, 128, 8
    $region17: #{tpu_custom_call.1} parent=1 // pred_fallthru
      _
    // Predicated region
    $region18: #{tpu_custom_call.1} parent=1 // pred_check
      _
    $region19: #{tpu_custom_call.1} parent=1 // pred_check_branch
      %126 = sbr.rel (0) target = $region21
    $region20: #{tpu_custom_call.1} parent=1 // pred_region
      %s128 = ssub.s32 16, 16
      %129 = vsyncadd [#allocation7], %s128
      %s131 = sshll.u32 [#allocation8], 4
      %s132 = int_to_ptr.vmem [resolvable:$true] %s131
      %134 = dma.vmem_to_hbm [thread:$0]  %s132, 16, %s3, [#allocation7]
    $region21: #{tpu_custom_call.1} parent=1 // pred_fallthru
      _
    // Predicated region
    $region22: #{tpu_custom_call.1} parent=1 // pred_check
      _
    $region23: #{tpu_custom_call.1} parent=1 // pred_check_branch
      %136 = sbr.rel (0) target = $region25
    $region24: #{tpu_custom_call.1} parent=1 // pred_region
      %137 = dma.done [#allocation4], 256
    $region25: #{tpu_custom_call.1} parent=1 // pred_fallthru
      _
    // Predicated region
    $region26: #{tpu_custom_call.1} parent=1 // pred_check
      _
    $region27: #{tpu_custom_call.1} parent=1 // pred_check_branch
      %139 = sbr.rel (0) target = $region29
    $region28: #{tpu_custom_call.1} parent=1 // pred_region
      %140 = dma.done [#allocation7], 256
    $region29: #{tpu_custom_call.1} parent=1 // pred_fallthru
      _
    // Predicated region
    $region30: #{tpu_custom_call.1} parent=1 // pred_check
      _
    $region31: #{tpu_custom_call.1} parent=1 // pred_check_branch
      %142 = sbr.rel (0) target = $region33
    $region32: #{tpu_custom_call.1} parent=1 // pred_region
      %143 = dma.done [#allocation7], 16
    $region33: #{tpu_custom_call.1} parent=1 // pred_fallthru
      _
    %144 = vsyncpa [#allocation3], 1
    %145 = vsyncpa [#allocation4], 1
    %146 = vsyncpa [#allocation7], 1

</llo_original>
